<compile_context>
chip_gen: v7x
topology: tpu7x:2x2x1
jax: 0.10.0
libtpu: 0.0.40
codegen_flags: <defaults>
</compile_context>

<pallas_src>
import functools

import jax
import jax.numpy as jnp
import numpy as np
from jax.experimental import pallas as pl
from jax.experimental.pallas import tpu as pltpu


def _round_up(x, m):
    return (x + m - 1) // m * m


def autoencoder_kernel(x_ref, w1_ref, b1_ref, w23_ref, b23_ref,
                       w4_ref, b4_ref, o_ref):
    """One (tile_b, input_dim) batch tile per grid step; weights stay resident."""
    x = x_ref[...]

    # Encoder: Linear(input_dim, 32) + ReLU.  f32 accumulation on the MXU,
    # bias-add / ReLU in f32 on the VPU (safe on v5e's f32-only VALU).
    h = jnp.dot(x, w1_ref[...], preferred_element_type=jnp.float32) + b1_ref[...]
    h = jnp.maximum(h, 0.0)

    # Folded Linear(32,16) -> Linear(16,32) affine map, then decoder ReLU.
    h = jnp.dot(h.astype(w23_ref.dtype), w23_ref[...],
                preferred_element_type=jnp.float32) + b23_ref[...]
    h = jnp.maximum(h, 0.0)

    # Decoder output layer: Linear(32, input_dim).
    y = jnp.dot(h.astype(w4_ref.dtype), w4_ref[...],
                preferred_element_type=jnp.float32) + b4_ref[...]
    o_ref[...] = y.astype(o_ref.dtype)


def autoencoder_forward(x, params, *, io_dtype=None, tile_b=None,
                        core_parallel=False, vmem_budget_bytes=32 << 20):
    """Fused AutoEncoder forward.

    x: [batch, input_dim] float32.
    params: w1..w4 in [in, out] layout (== PyTorch W.T), b1..b4 as [1, out], float32.
    io_dtype: None -> exact f32 path; jnp.bfloat16 -> bf16 I/O + bf16 MXU inputs
      with f32 accumulation (halves HBM traffic; compare with ~1e-2 tolerance).
    core_parallel: set True on v7x (2 TensorCores/chip) to shard batch tiles
      across both cores; leave False on v5e/v6e.
    """
    batch, input_dim = x.shape
    compute_dtype = np.dtype(x.dtype if io_dtype is None else io_dtype)

    # Fold the two middle linears (no nonlinearity between them):
    #   (h @ w2 + b2) @ w3 + b3 == h @ (w2 @ w3) + (b2 @ w3 + b3)
    w23 = params["w2"] @ params["w3"]
    b23 = params["b2"] @ params["w3"] + params["b3"]

    f32 = jnp.float32
    w1 = params["w1"].astype(compute_dtype)
    w23 = w23.astype(compute_dtype)
    w4 = params["w4"].astype(compute_dtype)
    b1 = params["b1"].astype(f32)
    b23 = b23.astype(f32)
    b4 = params["b4"].astype(f32)
    xin = x.astype(compute_dtype)

    # Batch tile from a VMEM budget: x and out tiles are each double-buffered
    # by the auto-pipeline -> 2 arrays * 2 buffers * tile_b * input_dim bytes.
    itemsize = compute_dtype.itemsize
    per_row_bytes = 2 * 2 * input_dim * itemsize
    if tile_b is None:
        tile_b = vmem_budget_bytes // per_row_bytes
        tile_b = max(8, min(8192, (tile_b // 8) * 8))
    tile_b = max(8, _round_up(min(tile_b, _round_up(batch, 8)), 8))
    grid = (pl.cdiv(batch, tile_b),)   # ragged tail: Pallas masks the partial block writeback

    # Explicit scoped-VMEM limit: tiles + (double-buffered) resident weights,
    # plus headroom; stays inside v7x's 64 MiB physical VMEM.
    weight_bytes = sum(int(a.size) * np.dtype(a.dtype).itemsize
                       for a in (w1, b1, w23, b23, w4, b4))
    vmem_needed = tile_b * per_row_bytes + 2 * weight_bytes
    vmem_limit = int(min(64 << 20, max(vmem_needed + (2 << 20), 8 << 20)))

    def resident(a):  # whole array, constant index_map -> stays in VMEM across steps
        return pl.BlockSpec(a.shape, lambda i: (0,) * a.ndim)

    flops = 2 * batch * (input_dim * 32 + 32 * 32 + 32 * input_dim)
    bytes_accessed = 2 * batch * input_dim * itemsize + weight_bytes

    out = pl.pallas_call(
        autoencoder_kernel,
        out_shape=jax.ShapeDtypeStruct((batch, input_dim), compute_dtype),
        grid=grid,
        in_specs=[pl.BlockSpec((tile_b, input_dim), lambda i: (i, 0)),
                  resident(w1), resident(b1),
                  resident(w23), resident(b23),
                  resident(w4), resident(b4)],
        out_specs=pl.BlockSpec((tile_b, input_dim), lambda i: (i, 0)),
        compiler_params=pltpu.CompilerParams(
            dimension_semantics=(
                (pltpu.CORE_PARALLEL if core_parallel else pltpu.PARALLEL),),
            vmem_limit_bytes=vmem_limit),
        cost_estimate=pl.CostEstimate(
            flops=flops, transcendentals=0, bytes_accessed=bytes_accessed),
    )(xin, w1, b1, w23, b23, w4, b4)

    return out


def init_params(key, input_dim):
    """Deterministic init mirroring nn.Linear's U(-1/sqrt(fan_in), +1/sqrt(fan_in))."""
    dims = [(input_dim, 32), (32, 16), (16, 32), (32, input_dim)]
    params = {}
    for i, (fan_in, fan_out) in enumerate(dims, start=1):
        key, kw, kb = jax.random.split(key, 3)
        bound = 1.0 / jnp.sqrt(float(fan_in))
        # stored directly in [in, out] layout (== PyTorch W.T)
        params[f"w{i}"] = jax.random.uniform(
            kw, (fan_in, fan_out), jnp.float32, minval=-bound, maxval=bound)
        params[f"b{i}"] = jax.random.uniform(
            kb, (1, fan_out), jnp.float32, minval=-bound, maxval=bound)
    return params


def reference_forward(x, p):
    # Unfolded pure-JAX reference matching the original PyTorch module exactly.
    h = jnp.maximum(x @ p["w1"] + p["b1"], 0.0)
    enc = h @ p["w2"] + p["b2"]
    h = jnp.maximum(enc @ p["w3"] + p["b3"], 0.0)
    return h @ p["w4"] + p["b4"]


if __name__ == "__main__":
    key = jax.random.PRNGKey(0)
    batch, input_dim = 8, 64

    key, kx = jax.random.split(key)
    x = jax.random.normal(kx, (batch, input_dim), dtype=jnp.float32)
    params = init_params(key, input_dim)

    ref = reference_forward(x, params)

    # Exact-semantics f32 path (matches the PyTorch forward numerics).
    out = jax.block_until_ready(jax.jit(autoencoder_forward)(x, params))
    assert out.shape == (batch, input_dim) and out.dtype == jnp.float32
    assert jnp.allclose(out, ref, atol=1e-4, rtol=1e-4)

    # bf16-I/O path (halved HBM traffic; relaxed tolerance vs the f32 reference).
    fwd_bf16 = jax.jit(functools.partial(autoencoder_forward, io_dtype=jnp.bfloat16))
    out_bf16 = jax.block_until_ready(fwd_bf16(x, params))
    assert out_bf16.shape == (batch, input_dim) and out_bf16.dtype == jnp.bfloat16
    assert jnp.allclose(out_bf16.astype(jnp.float32), ref, atol=5e-2, rtol=5e-2)

    print("KERNEL_OK")
</pallas_src>

<mosaic_0001>
module attributes {stable_mosaic.version = 11 : i64} {
  func.func @autoencoder_kernel(%arg0: i32, %arg1: memref<8x64xf32, #tpu.memory_space<vmem>>, %arg2: memref<64x32xf32, #tpu.memory_space<vmem>>, %arg3: memref<1x32xf32, #tpu.memory_space<vmem>>, %arg4: memref<32x32xf32, #tpu.memory_space<vmem>>, %arg5: memref<1x32xf32, #tpu.memory_space<vmem>>, %arg6: memref<32x64xf32, #tpu.memory_space<vmem>>, %arg7: memref<1x64xf32, #tpu.memory_space<vmem>>, %arg8: memref<8x64xf32, #tpu.memory_space<vmem>>) attributes {dimension_semantics = [#tpu.dimension_semantics<parallel>], iteration_bounds = array<i64: 1>, scalar_prefetch = 0 : i64, scratch_operands = 0 : i64, tpu.core_type = #tpu.core_type<tc>, window_params = [{transform_indices = @transform_0, window_bounds = array<i64: 8, 64>}, {pipeline_mode = #tpu.pipeline_mode<synchronous>, transform_indices = @transform_1, window_bounds = array<i64: 64, 32>}, {pipeline_mode = #tpu.pipeline_mode<synchronous>, transform_indices = @transform_2, window_bounds = array<i64: 1, 32>}, {pipeline_mode = #tpu.pipeline_mode<synchronous>, transform_indices = @transform_3, window_bounds = array<i64: 32, 32>}, {pipeline_mode = #tpu.pipeline_mode<synchronous>, transform_indices = @transform_4, window_bounds = array<i64: 1, 32>}, {pipeline_mode = #tpu.pipeline_mode<synchronous>, transform_indices = @transform_5, window_bounds = array<i64: 32, 64>}, {pipeline_mode = #tpu.pipeline_mode<synchronous>, transform_indices = @transform_6, window_bounds = array<i64: 1, 64>}, {transform_indices = @transform_7, window_bounds = array<i64: 8, 64>}]} {
    %c0 = arith.constant 0 : index
    %c0_0 = arith.constant 0 : index
    %0 = vector.load %arg1[%c0, %c0_0] : memref<8x64xf32, #tpu.memory_space<vmem>>, vector<8x64xf32>
    %c0_1 = arith.constant 0 : index
    %c0_2 = arith.constant 0 : index
    %1 = vector.load %arg2[%c0_1, %c0_2] : memref<64x32xf32, #tpu.memory_space<vmem>>, vector<64x32xf32>
    %cst = arith.constant dense<0.000000e+00> : vector<8x32xf32>
    %2 = tpu.matmul %0, %1, %cst {dimension_numbers = #tpu.dot_dimension_numbers<[1], [0], [0], [1], [0, 0, 1, 1], [], []>} : vector<8x64xf32>, vector<64x32xf32>, vector<8x32xf32> -> vector<8x32xf32>
    %c0_3 = arith.constant 0 : index
    %c0_4 = arith.constant 0 : index
    %3 = vector.load %arg3[%c0_3, %c0_4] : memref<1x32xf32, #tpu.memory_space<vmem>>, vector<1x32xf32>
    %4 = vector.broadcast %3 : vector<1x32xf32> to vector<8x32xf32>
    %5 = arith.addf %2, %4 : vector<8x32xf32>
    %cst_5 = arith.constant 0.000000e+00 : f32
    %6 = vector.broadcast %cst_5 : f32 to vector<8x32xf32>
    %7 = arith.maximumf %5, %6 : vector<8x32xf32>
    %c0_6 = arith.constant 0 : index
    %c0_7 = arith.constant 0 : index
    %8 = vector.load %arg4[%c0_6, %c0_7] : memref<32x32xf32, #tpu.memory_space<vmem>>, vector<32x32xf32>
    %cst_8 = arith.constant dense<0.000000e+00> : vector<8x32xf32>
    %9 = tpu.matmul %7, %8, %cst_8 {dimension_numbers = #tpu.dot_dimension_numbers<[1], [0], [0], [1], [0, 0, 1, 1], [], []>} : vector<8x32xf32>, vector<32x32xf32>, vector<8x32xf32> -> vector<8x32xf32>
    %c0_9 = arith.constant 0 : index
    %c0_10 = arith.constant 0 : index
    %10 = vector.load %arg5[%c0_9, %c0_10] : memref<1x32xf32, #tpu.memory_space<vmem>>, vector<1x32xf32>
    %11 = vector.broadcast %10 : vector<1x32xf32> to vector<8x32xf32>
    %12 = arith.addf %9, %11 : vector<8x32xf32>
    %cst_11 = arith.constant 0.000000e+00 : f32
    %13 = vector.broadcast %cst_11 : f32 to vector<8x32xf32>
    %14 = arith.maximumf %12, %13 : vector<8x32xf32>
    %c0_12 = arith.constant 0 : index
    %c0_13 = arith.constant 0 : index
    %15 = vector.load %arg6[%c0_12, %c0_13] : memref<32x64xf32, #tpu.memory_space<vmem>>, vector<32x64xf32>
    %cst_14 = arith.constant dense<0.000000e+00> : vector<8x64xf32>
    %16 = tpu.matmul %14, %15, %cst_14 {dimension_numbers = #tpu.dot_dimension_numbers<[1], [0], [0], [1], [0, 0, 1, 1], [], []>} : vector<8x32xf32>, vector<32x64xf32>, vector<8x64xf32> -> vector<8x64xf32>
    %c0_15 = arith.constant 0 : index
    %c0_16 = arith.constant 0 : index
    %17 = vector.load %arg7[%c0_15, %c0_16] : memref<1x64xf32, #tpu.memory_space<vmem>>, vector<1x64xf32>
    %18 = vector.broadcast %17 : vector<1x64xf32> to vector<8x64xf32>
    %19 = arith.addf %16, %18 : vector<8x64xf32>
    %c0_17 = arith.constant 0 : index
    %c0_18 = arith.constant 0 : index
    %20 = vector.load %arg8[%c0_17, %c0_18] : memref<8x64xf32, #tpu.memory_space<vmem>>, vector<8x64xf32>
    tpu.vector_store %arg8[%c0_17, %c0_18], %19 {strides = array<i32>} : memref<8x64xf32, #tpu.memory_space<vmem>>, vector<8x64xf32>,
    return
  }
  func.func @transform_0(%arg0: i32) -> (i32, i32) {
    %c0_i32 = arith.constant 0 : i32
    %c0_i32_0 = arith.constant 0 : i32
    return %arg0, %c0_i32 : i32, i32
  }
  func.func @transform_1(%arg0: i32) -> (i32, i32) {
    %c0_i32 = arith.constant 0 : i32
    %c0_i32_0 = arith.constant 0 : i32
    %c0_i32_1 = arith.constant 0 : i32
    return %c0_i32, %c0_i32_0 : i32, i32
  }
  func.func @transform_2(%arg0: i32) -> (i32, i32) {
    %c0_i32 = arith.constant 0 : i32
    %c0_i32_0 = arith.constant 0 : i32
    %c0_i32_1 = arith.constant 0 : i32
    return %c0_i32, %c0_i32_0 : i32, i32
  }
  func.func @transform_3(%arg0: i32) -> (i32, i32) {
    %c0_i32 = arith.constant 0 : i32
    %c0_i32_0 = arith.constant 0 : i32
    %c0_i32_1 = arith.constant 0 : i32
    return %c0_i32, %c0_i32_0 : i32, i32
  }
  func.func @transform_4(%arg0: i32) -> (i32, i32) {
    %c0_i32 = arith.constant 0 : i32
    %c0_i32_0 = arith.constant 0 : i32
    %c0_i32_1 = arith.constant 0 : i32
    return %c0_i32, %c0_i32_0 : i32, i32
  }
  func.func @transform_5(%arg0: i32) -> (i32, i32) {
    %c0_i32 = arith.constant 0 : i32
    %c0_i32_0 = arith.constant 0 : i32
    %c0_i32_1 = arith.constant 0 : i32
    return %c0_i32, %c0_i32_0 : i32, i32
  }
  func.func @transform_6(%arg0: i32) -> (i32, i32) {
    %c0_i32 = arith.constant 0 : i32
    %c0_i32_0 = arith.constant 0 : i32
    %c0_i32_1 = arith.constant 0 : i32
    return %c0_i32, %c0_i32_0 : i32, i32
  }
  func.func @transform_7(%arg0: i32) -> (i32, i32) {
    %c0_i32 = arith.constant 0 : i32
    %c0_i32_0 = arith.constant 0 : i32
    return %arg0, %c0_i32 : i32, i32
  }
}

</mosaic_0001>

<llo_original>
// kernel: autoencoder_forward.1
$region0: #{autoencoder_forward.1}
  #allocation0 [shape = 'u32[]', space=smem, size = 0x4, offset = 0x4, fixed_abs, tag = 'smem constant byte address 0x4 - core index']
  #allocation1 [shape = 'u32[144,128]{1,0:T(1,128)}', space=vmem, size = 0x12000, scoped, tag = 'internal scratch']
  %s0 = inlined_call_operand.vmem [shape: f32[8,64], index: 0, kind: input, shape index: {}]
  %s1 = inlined_call_operand.vmem [shape: f32[64,32], index: 1, kind: input, shape index: {}]
  %s2 = inlined_call_operand.vmem [shape: f32[1,32], index: 2, kind: input, shape index: {}]
  %s3 = inlined_call_operand.vmem [shape: f32[32,32], index: 3, kind: input, shape index: {}]
  %s4 = inlined_call_operand.vmem [shape: f32[1,32], index: 4, kind: input, shape index: {}]
  %s5 = inlined_call_operand.vmem [shape: f32[32,64], index: 5, kind: input, shape index: {}]
  %s6 = inlined_call_operand.vmem [shape: f32[1,64], index: 6, kind: input, shape index: {}]
  %s7 = inlined_call_operand.hbm [shape: f32[8,64], index: 7, kind: output, shape index: {}]
  %s8 = sld [smem:[#allocation0]]
  $region38: #{autoencoder_forward.1} parent=0
    _
  %s10 = ssub.s32 1, %s8
  %s11 = scalar_select 0, %s10, %s8
  $region1: #{autoencoder_forward.1} parent=0
    #allocation2 [shape = 'u8[4096]{0}', space=vmem, size = 0x1000, scoped, tag = 'output window, operand 0, single buffered']
    #allocation3 [shape = 's32[1]{0}', space=sflag, size = 0x4, scoped, tag = 'scoped memory for autoencoder_forward.1']
    %12 = vsyncpa [#allocation3], 0
    // Predicated region
    $region2: #{autoencoder_forward.1} parent=1 // pred_check
      _
    $region3: #{autoencoder_forward.1} parent=1 // pred_check_branch
      %14 = sbr.rel (0) target = $region5
    $region4: #{autoencoder_forward.1} parent=1 // pred_region
      _
    $region5: #{autoencoder_forward.1} parent=1 // pred_fallthru
      _
    // Predicated region
    $region6: #{autoencoder_forward.1} parent=1 // pred_check
      _
    $region7: #{autoencoder_forward.1} parent=1 // pred_check_branch
      %16 = sbr.rel (0) target = $region9
    $region8: #{autoencoder_forward.1} parent=1 // pred_region
      _
    $region9: #{autoencoder_forward.1} parent=1 // pred_fallthru
      _
    // Predicated region
    $region10: #{autoencoder_forward.1} parent=1 // pred_check
      _
    $region11: #{autoencoder_forward.1} parent=1 // pred_check_branch
      %18 = sbr.rel (0) target = $region13
    $region12: #{autoencoder_forward.1} parent=1 // pred_region
      _
    $region13: #{autoencoder_forward.1} parent=1 // pred_fallthru
      _
    // Predicated region
    $region14: #{autoencoder_forward.1} parent=1 // pred_check
      _
    $region15: #{autoencoder_forward.1} parent=1 // pred_check_branch
      %20 = sbr.rel (0) target = $region17
    $region16: #{autoencoder_forward.1} parent=1 // pred_region
      _
    $region17: #{autoencoder_forward.1} parent=1 // pred_fallthru
      _
    // Predicated region
    $region18: #{autoencoder_forward.1} parent=1 // pred_check
      _
    $region19: #{autoencoder_forward.1} parent=1 // pred_check_branch
      %22 = sbr.rel (0) target = $region21
    $region20: #{autoencoder_forward.1} parent=1 // pred_region
      _
    $region21: #{autoencoder_forward.1} parent=1 // pred_fallthru
      _
    // Predicated region
    $region22: #{autoencoder_forward.1} parent=1 // pred_check
      _
    $region23: #{autoencoder_forward.1} parent=1 // pred_check_branch
      %24 = sbr.rel (0) target = $region25
    $region24: #{autoencoder_forward.1} parent=1 // pred_region
      _
    $region25: #{autoencoder_forward.1} parent=1 // pred_fallthru
      _
    // Predicated region
    $region26: #{autoencoder_forward.1} parent=1 // pred_check
      _
    $region27: #{autoencoder_forward.1} parent=1 // pred_check_branch
      %26 = sbr.rel (0) target = $region29
    $region28: #{autoencoder_forward.1} parent=1 // pred_region
      _
    $region29: #{autoencoder_forward.1} parent=1 // pred_fallthru
      _
    %v27 = vld [vmem:[%s0] sm:$0xff]
    %v28 = vld [vmem:[%s1] sm:$0xff]
    %v29 = vld [vmem:[%s1 + $0x8] sm:$0xff]
    %v30 = vld [vmem:[%s1 + $0x10] sm:$0xff]
    %v31 = vld [vmem:[%s1 + $0x18] sm:$0xff]
    %v32 = vld [vmem:[%s1 + $0x20] sm:$0xff]
    %v33 = vld [vmem:[%s1 + $0x28] sm:$0xff]
    %v34 = vld [vmem:[%s1 + $0x30] sm:$0xff]
    %v35 = vld [vmem:[%s1 + $0x38] sm:$0xff]
    %v36 = vld [vmem:[%s2] sm:$0x1]
    %v38 = vlaneseq
    %v39 = vshrl.u32 %v38, 7
    %v40 = vsub.s32 0, %v39
    %v41 = vrot.slane %v36, %v40
    %vm43 = vcmask 523264
    %v45 = vsel %vm43, %v27, 0
    %47 = vmatprep.subr.mxu0 0.0
    %48 = vmatpush1.msra.mxu0 %v28
    %49 = vmatprep.subr.mxu0 0.0
    %50 = vmatpush1.msra.mxu0 %v29
    %51 = vmatprep.subr.mxu0 0.0
    %52 = vmatpush1.msra.mxu0 %v30
    %53 = vmatprep.subr.mxu0 0.0
    %54 = vmatpush1.msra.mxu0 %v31
    %55 = vmatprep.subr.mxu0 0.0
    %56 = vmatpush1.msra.mxu0 %v32
    %57 = vmatprep.subr.mxu0 0.0
    %58 = vmatpush1.msra.mxu0 %v33
    %59 = vmatprep.subr.mxu0 0.0
    %60 = vmatpush1.msra.mxu0 %v34
    %61 = vmatprep.subr.mxu0 0.0
    %62 = vmatpush1.msra.mxu0 %v35
    %63 = vmatprep.subr.mxu0 0.0
    %64 = vmatpush1.msra.mxu0 0.0
    %65 = vmatprep.subr.mxu0 0.0
    %66 = vmatpush1.msra.mxu0 0.0
    %67 = vmatprep.subr.mxu0 0.0
    %68 = vmatpush1.msra.mxu0 0.0
    %69 = vmatprep.subr.mxu0 0.0
    %70 = vmatpush1.msra.mxu0 0.0
    %71 = vmatprep.subr.mxu0 0.0
    %72 = vmatpush1.msra.mxu0 0.0
    %73 = vmatprep.subr.mxu0 0.0
    %74 = vmatpush1.msra.mxu0 0.0
    %75 = vmatprep.subr.mxu0 0.0
    %76 = vmatpush1.msra.mxu0 0.0
    %77 = vmatprep.subr.mxu0 0.0
    %78 = vmatpush1.msra.mxu0 0.0
    %79 = vmatprep.subr.mxu0 0.0
    %80 = vmatpush1.msra.mxu0 0.0
    %81 = vmatprep.subr.mxu0 0.0
    %82 = vmatpush1.msra.mxu0 0.0
    %83 = vmatprep.subr.mxu0 0.0
    %84 = vmatpush1.msra.mxu0 0.0
    %85 = vmatprep.subr.mxu0 0.0
    %86 = vmatpush1.msra.mxu0 0.0
    %87 = vmatprep.subr.mxu0 0.0
    %88 = vmatpush1.msra.mxu0 0.0
    %89 = vmatprep.subr.mxu0 0.0
    %90 = vmatpush1.msra.mxu0 0.0
    %91 = vmatprep.subr.mxu0 0.0
    %92 = vmatpush1.msra.mxu0 0.0
    %93 = vmatprep.subr.mxu0 0.0
    %94 = vmatpush1.msra.mxu0 0.0
    %95 = vmatprep.subr.mxu0 0.0
    %96 = vmatpush1.msra.mxu0 0.0
    %97 = vmatprep.subr.mxu0 0.0
    %98 = vmatpush1.msra.mxu0 0.0
    %99 = vmatprep.subr.mxu0 0.0
    %100 = vmatpush1.msra.mxu0 0.0
    %101 = vmatprep.subr.mxu0 0.0
    %102 = vmatpush1.msra.mxu0 0.0
    %103 = vmatprep.subr.mxu0 0.0
    %104 = vmatpush1.msra.mxu0 0.0
    %105 = vmatprep.subr.mxu0 0.0
    %106 = vmatpush1.msra.mxu0 0.0
    %107 = vmatprep.subr.mxu0 0.0
    %108 = vmatpush1.msra.mxu0 0.0
    %109 = vmatprep.subr.mxu0 0.0
    %110 = vmatpush1.msra.mxu0 0.0
    %111 = vmatprep.mubr.f32.mxu0 0.0
    %112 = vmatmul.mubr.f32.gmra.mrb[0].mxu0 %v45
    %v113 = vpop.f32.mrb[0].mxu0
    %v114 = vadd.f32 %v41, %v113
    %v115 = vpop.f32.mrb[0].mxu0
    %116 = vdwg.mxu0
    %v117 = vmax.f32 %v114, 0.0
    %v118 = vld [vmem:[%s3] sm:$0xff]
    %v119 = vld [vmem:[%s3 + $0x8] sm:$0xff]
    %v120 = vld [vmem:[%s3 + $0x10] sm:$0xff]
    %v121 = vld [vmem:[%s3 + $0x18] sm:$0xff]
    %v122 = vld [vmem:[%s4] sm:$0x1]
    %v124 = vlaneseq
    %v125 = vshrl.u32 %v124, 7
    %v126 = vsub.s32 0, %v125
    %v127 = vrot.slane %v122, %v126
    %vm129 = vcmask 261120
    %v131 = vsel %vm129, %v117, 0
    %133 = vmatprep.subr.mxu0 0.0
    %134 = vmatpush1.msra.mxu0 %v118
    %135 = vmatprep.subr.mxu0 0.0
    %136 = vmatpush1.msra.mxu0 %v119
    %137 = vmatprep.subr.mxu0 0.0
    %138 = vmatpush1.msra.mxu0 %v120
    %139 = vmatprep.subr.mxu0 0.0
    %140 = vmatpush1.msra.mxu0 %v121
    %141 = vmatprep.subr.mxu0 0.0
    %142 = vmatpush1.msra.mxu0 0.0
    %143 = vmatprep.subr.mxu0 0.0
    %144 = vmatpush1.msra.mxu0 0.0
    %145 = vmatprep.subr.mxu0 0.0
    %146 = vmatpush1.msra.mxu0 0.0
    %147 = vmatprep.subr.mxu0 0.0
    %148 = vmatpush1.msra.mxu0 0.0
    %149 = vmatprep.subr.mxu0 0.0
    %150 = vmatpush1.msra.mxu0 0.0
    %151 = vmatprep.subr.mxu0 0.0
    %152 = vmatpush1.msra.mxu0 0.0
    %153 = vmatprep.subr.mxu0 0.0
    %154 = vmatpush1.msra.mxu0 0.0
    %155 = vmatprep.subr.mxu0 0.0
    %156 = vmatpush1.msra.mxu0 0.0
    %157 = vmatprep.subr.mxu0 0.0
    %158 = vmatpush1.msra.mxu0 0.0
    %159 = vmatprep.subr.mxu0 0.0
    %160 = vmatpush1.msra.mxu0 0.0
    %161 = vmatprep.subr.mxu0 0.0
    %162 = vmatpush1.msra.mxu0 0.0
    %163 = vmatprep.subr.mxu0 0.0
    %164 = vmatpush1.msra.mxu0 0.0
    %165 = vmatprep.subr.mxu0 0.0
    %166 = vmatpush1.msra.mxu0 0.0
    %167 = vmatprep.subr.mxu0 0.0
    %168 = vmatpush1.msra.mxu0 0.0
    %169 = vmatprep.subr.mxu0 0.0
    %170 = vmatpush1.msra.mxu0 0.0
    %171 = vmatprep.subr.mxu0 0.0
    %172 = vmatpush1.msra.mxu0 0.0
    %173 = vmatprep.subr.mxu0 0.0
    %174 = vmatpush1.msra.mxu0 0.0
    %175 = vmatprep.subr.mxu0 0.0
    %176 = vmatpush1.msra.mxu0 0.0
    %177 = vmatprep.subr.mxu0 0.0
    %178 = vmatpush1.msra.mxu0 0.0
    %179 = vmatprep.subr.mxu0 0.0
    %180 = vmatpush1.msra.mxu0 0.0
    %181 = vmatprep.subr.mxu0 0.0
    %182 = vmatpush1.msra.mxu0 0.0
    %183 = vmatprep.subr.mxu0 0.0
    %184 = vmatpush1.msra.mxu0 0.0
    %185 = vmatprep.subr.mxu0 0.0
    %186 = vmatpush1.msra.mxu0 0.0
    %187 = vmatprep.subr.mxu0 0.0
    %188 = vmatpush1.msra.mxu0 0.0
    %189 = vmatprep.subr.mxu0 0.0
    %190 = vmatpush1.msra.mxu0 0.0
    %191 = vmatprep.subr.mxu0 0.0
    %192 = vmatpush1.msra.mxu0 0.0
    %193 = vmatprep.subr.mxu0 0.0
    %194 = vmatpush1.msra.mxu0 0.0
    %195 = vmatprep.subr.mxu0 0.0
    %196 = vmatpush1.msra.mxu0 0.0
    %197 = vmatprep.mubr.f32.mxu0 0.0
    %198 = vmatmul.mubr.f32.gmra.mrb[0].mxu0 %v131
    %v199 = vpop.f32.mrb[0].mxu0
    %v200 = vadd.f32 %v127, %v199
    %v201 = vpop.f32.mrb[0].mxu0
    %202 = vdwg.mxu0
    %v203 = vmax.f32 %v200, 0.0
    %v204 = vld [vmem:[%s5] sm:$0xff]
    %v205 = vld [vmem:[%s5 + $0x8] sm:$0xff]
    %v206 = vld [vmem:[%s5 + $0x10] sm:$0xff]
    %v207 = vld [vmem:[%s5 + $0x18] sm:$0xff]
    %v208 = vld [vmem:[%s6] sm:$0x1]
    %v210 = vlaneseq
    %v211 = vshrl.u32 %v210, 7
    %v212 = vsub.s32 0, %v211
    %v213 = vrot.slane %v208, %v212
    %v216 = vsel %vm129, %v203, 0
    %218 = vmatprep.subr.mxu0 0.0
    %219 = vmatpush1.msra.mxu0 %v204
    %220 = vmatprep.subr.mxu0 0.0
    %221 = vmatpush1.msra.mxu0 %v205
    %222 = vmatprep.subr.mxu0 0.0
    %223 = vmatpush1.msra.mxu0 %v206
    %224 = vmatprep.subr.mxu0 0.0
    %225 = vmatpush1.msra.mxu0 %v207
    %226 = vmatprep.subr.mxu0 0.0
    %227 = vmatpush1.msra.mxu0 0.0
    %228 = vmatprep.subr.mxu0 0.0
    %229 = vmatpush1.msra.mxu0 0.0
    %230 = vmatprep.subr.mxu0 0.0
    %231 = vmatpush1.msra.mxu0 0.0
    %232 = vmatprep.subr.mxu0 0.0
    %233 = vmatpush1.msra.mxu0 0.0
    %234 = vmatprep.subr.mxu0 0.0
    %235 = vmatpush1.msra.mxu0 0.0
    %236 = vmatprep.subr.mxu0 0.0
    %237 = vmatpush1.msra.mxu0 0.0
    %238 = vmatprep.subr.mxu0 0.0
    %239 = vmatpush1.msra.mxu0 0.0
    %240 = vmatprep.subr.mxu0 0.0
    %241 = vmatpush1.msra.mxu0 0.0
    %242 = vmatprep.subr.mxu0 0.0
    %243 = vmatpush1.msra.mxu0 0.0
    %244 = vmatprep.subr.mxu0 0.0
    %245 = vmatpush1.msra.mxu0 0.0
    %246 = vmatprep.subr.mxu0 0.0
    %247 = vmatpush1.msra.mxu0 0.0
    %248 = vmatprep.subr.mxu0 0.0
    %249 = vmatpush1.msra.mxu0 0.0
    %250 = vmatprep.subr.mxu0 0.0
    %251 = vmatpush1.msra.mxu0 0.0
    %252 = vmatprep.subr.mxu0 0.0
    %253 = vmatpush1.msra.mxu0 0.0
    %254 = vmatprep.subr.mxu0 0.0
    %255 = vmatpush1.msra.mxu0 0.0
    %256 = vmatprep.subr.mxu0 0.0
    %257 = vmatpush1.msra.mxu0 0.0
    %258 = vmatprep.subr.mxu0 0.0
    %259 = vmatpush1.msra.mxu0 0.0
    %260 = vmatprep.subr.mxu0 0.0
    %261 = vmatpush1.msra.mxu0 0.0
    %262 = vmatprep.subr.mxu0 0.0
    %263 = vmatpush1.msra.mxu0 0.0
    %264 = vmatprep.subr.mxu0 0.0
    %265 = vmatpush1.msra.mxu0 0.0
    %266 = vmatprep.subr.mxu0 0.0
    %267 = vmatpush1.msra.mxu0 0.0
    %268 = vmatprep.subr.mxu0 0.0
    %269 = vmatpush1.msra.mxu0 0.0
    %270 = vmatprep.subr.mxu0 0.0
    %271 = vmatpush1.msra.mxu0 0.0
    %272 = vmatprep.subr.mxu0 0.0
    %273 = vmatpush1.msra.mxu0 0.0
    %274 = vmatprep.subr.mxu0 0.0
    %275 = vmatpush1.msra.mxu0 0.0
    %276 = vmatprep.subr.mxu0 0.0
    %277 = vmatpush1.msra.mxu0 0.0
    %278 = vmatprep.subr.mxu0 0.0
    %279 = vmatpush1.msra.mxu0 0.0
    %280 = vmatprep.subr.mxu0 0.0
    %281 = vmatpush1.msra.mxu0 0.0
    %282 = vmatprep.mubr.f32.mxu0 0.0
    %283 = vmatmul.mubr.f32.gmra.mrb[0].mxu0 %v216
    %v284 = vpop.f32.mrb[0].mxu0
    %v285 = vadd.f32 %v213, %v284
    %v286 = vpop.f32.mrb[0].mxu0
    %287 = vdwg.mxu0
    %288 = vst.msk [vmem:[#allocation2] sm:$0xff] %vm43, %v285
    // Predicated region
    $region30: #{autoencoder_forward.1} parent=1 // pred_check
      _
    $region31: #{autoencoder_forward.1} parent=1 // pred_check_branch
      %290 = sbr.rel (0) target = $region33
    $region32: #{autoencoder_forward.1} parent=1 // pred_region
      %s292 = ssub.s32 128, 128
      %293 = vsyncadd [#allocation3], %s292
      %s295 = sshll.u32 [#allocation2], 4
      %s296 = int_to_ptr.vmem [resolvable:$true] %s295
      %298 = dma.vmem_to_hbm [thread:$0]  %s296, 128, %s7, [#allocation3]
    $region33: #{autoencoder_forward.1} parent=1 // pred_fallthru
      _
    // Predicated region
    $region34: #{autoencoder_forward.1} parent=1 // pred_check
      _
    $region35: #{autoencoder_forward.1} parent=1 // pred_check_branch
      %300 = sbr.rel (0) target = $region37
    $region36: #{autoencoder_forward.1} parent=1 // pred_region
      %301 = dma.done [#allocation3], 128
    $region37: #{autoencoder_forward.1} parent=1 // pred_fallthru
      _
    %302 = vsyncpa [#allocation3], 1

</llo_original>
